<compile_context>
chip_gen: v7x
topology: tpu7x:2x2x1
jax: 0.10.0
libtpu: 0.0.40
codegen_flags: <defaults>
</compile_context>

<pallas_src>
import math

import jax
import jax.numpy as jnp
from jax.experimental import pallas as pl
from jax.experimental.pallas import tpu as pltpu


D_IN, D_H1, D_H2, D_OUT = 9, 256, 128, 4


def _round_up(x, m):
    return ((x + m - 1) // m) * m


def _mlp_kernel(x_ref, w1_ref, b1_ref, w2_ref, b2_ref, w3_ref, b3_ref, o_ref):
    # Transposed ("batch on lanes") dataflow: activations are (features, TB).
    xT = x_ref[...].astype(jnp.bfloat16)                          # (9, TB)

    # Layer 1: Linear(9 -> 256) on the MXU. K=9 padding is free; only 256
    # rows are pushed per lane tile in this layout.
    h1 = jnp.dot(w1_ref[...], xT,
                 preferred_element_type=jnp.float32)              # (256, TB)
    h1 = jnp.maximum(h1 + b1_ref[...], 0.0)

    # Dropout(0.2): identity in eval mode.

    # Layer 2: Linear(256 -> 128), bf16 operands, f32 accumulate, N=TB dense.
    h2 = jnp.dot(w2_ref[...], h1.astype(jnp.bfloat16),
                 preferred_element_type=jnp.float32)              # (128, TB)
    h2 = jnp.maximum(h2 + b2_ref[...], 0.0)

    # Head: Linear(128 -> 4); just 4 rows pushed per lane tile.
    q = jnp.dot(w3_ref[...], h2.astype(jnp.bfloat16),
                preferred_element_type=jnp.float32)               # (4, TB)
    o_ref[...] = q + b3_ref[...]                                  # lane-dense store


def fcq_network_forward(state, params, *, tb=2048):
    """state: (B, 9) float32. Returns Q-values (B, 4) float32."""
    w1, b1, w2, b2, w3, b3 = params
    B = state.shape[0]

    # Lane tile (batch lives on lanes => multiple of 128).  Cap at ceil(B/2)
    # so the grid has >=2 steps whenever possible (v7x megacore split).
    TB = _round_up(min(tb, max(1, pl.cdiv(B, 2))), 128)
    TB = min(TB, _round_up(B, 128))
    Bp = _round_up(B, TB)
    grid = (Bp // TB,)

    # Transpose to (9, B) and zero-pad the lane (batch) axis up to Bp.
    # One tiny wrapper op over B*9 floats; every kernel block is full.
    xT = state.T
    if Bp != B:
        xT = jnp.pad(xT, ((0, 0), (0, Bp - B)))

    # Weights/biases: full-array blocks with a constant block index so they
    # stay VMEM-resident across all grid steps.
    def resident(a):
        return pl.BlockSpec(a.shape, lambda i: (0, 0))

    flops = 2 * Bp * (D_IN * D_H1 + D_H1 * D_H2 + D_H2 * D_OUT)
    bytes_accessed = (
        Bp * D_IN * 4 + Bp * D_OUT * 4                       # streamed x / q
        + (w1.size + w2.size + w3.size) * 2                  # bf16 weights
        + (b1.size + b2.size + b3.size) * 4)                 # f32 biases

    qT = pl.pallas_call(
        _mlp_kernel,
        out_shape=jax.ShapeDtypeStruct((D_OUT, Bp), jnp.float32),
        grid=grid,
        in_specs=[
            pl.BlockSpec((D_IN, TB), lambda i: (0, i)),
            resident(w1), resident(b1),
            resident(w2), resident(b2),
            resident(w3), resident(b3),
        ],
        out_specs=pl.BlockSpec((D_OUT, TB), lambda i: (0, i)),
        compiler_params=pltpu.CompilerParams(
            dimension_semantics=("parallel",)),
        cost_estimate=pl.CostEstimate(
            flops=flops, transcendentals=0, bytes_accessed=bytes_accessed),
    )(xT, w1, b1, w2, b2, w3, b3)

    q = qT.T                                                 # (Bp, 4)
    return q[:B] if Bp != B else q


def init_params(key):
    """torch.nn.Linear-style init (uniform +-1/sqrt(fan_in)).

    Weights are stored in the torch-native (out_features, in_features) layout
    (the transposed kernel consumes them directly) as bf16 MXU operands;
    biases stay f32 with shape (out_features, 1) for lane broadcast."""
    dims = [(D_IN, D_H1), (D_H1, D_H2), (D_H2, D_OUT)]
    params = []
    for fan_in, fan_out in dims:
        key, kw, kb = jax.random.split(key, 3)
        bound = 1.0 / math.sqrt(fan_in)
        w = jax.random.uniform(kw, (fan_out, fan_in), jnp.float32, -bound, bound)
        b = jax.random.uniform(kb, (fan_out, 1), jnp.float32, -bound, bound)
        params += [w.astype(jnp.bfloat16), b]
    return tuple(params)


def _reference_forward(state, params):
    """Pure-JAX reference with the same bf16 rounding points as the kernel."""
    w1, b1, w2, b2, w3, b3 = params

    def lin(h, w, b):
        return jnp.dot(h.astype(jnp.bfloat16), w.T,
                       preferred_element_type=jnp.float32) + b[:, 0]

    h1 = jnp.maximum(lin(state, w1, b1), 0.0)
    h2 = jnp.maximum(lin(h1, w2, b2), 0.0)
    return lin(h2, w3, b3)


if __name__ == "__main__":
    key = jax.random.PRNGKey(0)
    key, kx1, kx2 = jax.random.split(key, 3)
    params = init_params(key)

    # Small single-tile case (batch=8 states of dim 9).
    B1 = 8
    state1 = jax.random.normal(kx1, (B1, D_IN), jnp.float32)
    q1 = jax.block_until_ready(fcq_network_forward(state1, params))
    q1_ref = _reference_forward(state1, params)
    assert q1.shape == (B1, D_OUT)
    assert jnp.allclose(q1, q1_ref, atol=1e-3, rtol=1e-3), "mismatch vs reference (B=8)"

    # Multi-tile + padded-batch case (3 lane tiles of 128, last one padded).
    B2 = 300
    state2 = jax.random.normal(kx2, (B2, D_IN), jnp.float32)
    q2 = jax.block_until_ready(fcq_network_forward(state2, params, tb=128))
    q2_ref = _reference_forward(state2, params)
    assert q2.shape == (B2, D_OUT)
    assert jnp.allclose(q2, q2_ref, atol=1e-3, rtol=1e-3), "mismatch vs reference (B=300)"

    print("KERNEL_OK")
</pallas_src>

<mosaic_0001>
module attributes {stable_mosaic.version = 11 : i64} {
  func.func @_mlp_kernel(%arg0: i32, %arg1: memref<9x128xf32, #tpu.memory_space<vmem>>, %arg2: memref<256x9xbf16, #tpu.memory_space<vmem>>, %arg3: memref<256x1xf32, #tpu.memory_space<vmem>>, %arg4: memref<128x256xbf16, #tpu.memory_space<vmem>>, %arg5: memref<128x1xf32, #tpu.memory_space<vmem>>, %arg6: memref<4x128xbf16, #tpu.memory_space<vmem>>, %arg7: memref<4x1xf32, #tpu.memory_space<vmem>>, %arg8: memref<4x128xf32, #tpu.memory_space<vmem>>) attributes {dimension_semantics = [#tpu.dimension_semantics<parallel>], iteration_bounds = array<i64: 1>, scalar_prefetch = 0 : i64, scratch_operands = 0 : i64, tpu.core_type = #tpu.core_type<tc>, window_params = [{transform_indices = @transform_0, window_bounds = array<i64: 9, 128>}, {pipeline_mode = #tpu.pipeline_mode<synchronous>, transform_indices = @transform_1, window_bounds = array<i64: 256, 9>}, {pipeline_mode = #tpu.pipeline_mode<synchronous>, transform_indices = @transform_2, window_bounds = array<i64: 256, 1>}, {pipeline_mode = #tpu.pipeline_mode<synchronous>, transform_indices = @transform_3, window_bounds = array<i64: 128, 256>}, {pipeline_mode = #tpu.pipeline_mode<synchronous>, transform_indices = @transform_4, window_bounds = array<i64: 128, 1>}, {pipeline_mode = #tpu.pipeline_mode<synchronous>, transform_indices = @transform_5, window_bounds = array<i64: 4, 128>}, {pipeline_mode = #tpu.pipeline_mode<synchronous>, transform_indices = @transform_6, window_bounds = array<i64: 4, 1>}, {transform_indices = @transform_7, window_bounds = array<i64: 4, 128>}]} {
    %c0 = arith.constant 0 : index
    %c0_0 = arith.constant 0 : index
    %0 = vector.load %arg1[%c0, %c0_0] : memref<9x128xf32, #tpu.memory_space<vmem>>, vector<9x128xf32>
    %1 = arith.truncf %0 : vector<9x128xf32> to vector<9x128xbf16>
    %c0_1 = arith.constant 0 : index
    %c0_2 = arith.constant 0 : index
    %2 = vector.load %arg2[%c0_1, %c0_2] : memref<256x9xbf16, #tpu.memory_space<vmem>>, vector<256x9xbf16>
    %cst = arith.constant dense<0.000000e+00> : vector<256x128xf32>
    %3 = tpu.matmul %2, %1, %cst {dimension_numbers = #tpu.dot_dimension_numbers<[1], [0], [0], [1], [0, 0, 1, 1], [], []>} : vector<256x9xbf16>, vector<9x128xbf16>, vector<256x128xf32> -> vector<256x128xf32>
    %c0_3 = arith.constant 0 : index
    %c0_4 = arith.constant 0 : index
    %4 = vector.load %arg3[%c0_3, %c0_4] : memref<256x1xf32, #tpu.memory_space<vmem>>, vector<256x1xf32>
    %5 = vector.broadcast %4 : vector<256x1xf32> to vector<256x128xf32>
    %6 = arith.addf %3, %5 : vector<256x128xf32>
    %cst_5 = arith.constant 0.000000e+00 : f32
    %7 = vector.broadcast %cst_5 : f32 to vector<256x128xf32>
    %8 = arith.maximumf %6, %7 : vector<256x128xf32>
    %c0_6 = arith.constant 0 : index
    %c0_7 = arith.constant 0 : index
    %9 = vector.load %arg4[%c0_6, %c0_7] : memref<128x256xbf16, #tpu.memory_space<vmem>>, vector<128x256xbf16>
    %10 = arith.truncf %8 : vector<256x128xf32> to vector<256x128xbf16>
    %cst_8 = arith.constant dense<0.000000e+00> : vector<128x128xf32>
    %11 = tpu.matmul %9, %10, %cst_8 {dimension_numbers = #tpu.dot_dimension_numbers<[1], [0], [0], [1], [0, 0, 1, 1], [], []>} : vector<128x256xbf16>, vector<256x128xbf16>, vector<128x128xf32> -> vector<128x128xf32>
    %c0_9 = arith.constant 0 : index
    %c0_10 = arith.constant 0 : index
    %12 = vector.load %arg5[%c0_9, %c0_10] : memref<128x1xf32, #tpu.memory_space<vmem>>, vector<128x1xf32>
    %13 = vector.broadcast %12 : vector<128x1xf32> to vector<128x128xf32>
    %14 = arith.addf %11, %13 : vector<128x128xf32>
    %cst_11 = arith.constant 0.000000e+00 : f32
    %15 = vector.broadcast %cst_11 : f32 to vector<128x128xf32>
    %16 = arith.maximumf %14, %15 : vector<128x128xf32>
    %c0_12 = arith.constant 0 : index
    %c0_13 = arith.constant 0 : index
    %17 = vector.load %arg6[%c0_12, %c0_13] : memref<4x128xbf16, #tpu.memory_space<vmem>>, vector<4x128xbf16>
    %18 = arith.truncf %16 : vector<128x128xf32> to vector<128x128xbf16>
    %cst_14 = arith.constant dense<0.000000e+00> : vector<4x128xf32>
    %19 = tpu.matmul %17, %18, %cst_14 {dimension_numbers = #tpu.dot_dimension_numbers<[1], [0], [0], [1], [0, 0, 1, 1], [], []>} : vector<4x128xbf16>, vector<128x128xbf16>, vector<4x128xf32> -> vector<4x128xf32>
    %c0_15 = arith.constant 0 : index
    %c0_16 = arith.constant 0 : index
    %20 = vector.load %arg7[%c0_15, %c0_16] : memref<4x1xf32, #tpu.memory_space<vmem>>, vector<4x1xf32>
    %21 = vector.broadcast %20 : vector<4x1xf32> to vector<4x128xf32>
    %22 = arith.addf %19, %21 : vector<4x128xf32>
    %c0_17 = arith.constant 0 : index
    %c0_18 = arith.constant 0 : index
    %23 = vector.load %arg8[%c0_17, %c0_18] : memref<4x128xf32, #tpu.memory_space<vmem>>, vector<4x128xf32>
    tpu.vector_store %arg8[%c0_17, %c0_18], %22 {strides = array<i32>} : memref<4x128xf32, #tpu.memory_space<vmem>>, vector<4x128xf32>,
    return
  }
  func.func @transform_0(%arg0: i32) -> (i32, i32) {
    %c0_i32 = arith.constant 0 : i32
    %c0_i32_0 = arith.constant 0 : i32
    return %c0_i32, %arg0 : i32, i32
  }
  func.func @transform_1(%arg0: i32) -> (i32, i32) {
    %c0_i32 = arith.constant 0 : i32
    %c0_i32_0 = arith.constant 0 : i32
    %c0_i32_1 = arith.constant 0 : i32
    return %c0_i32, %c0_i32_0 : i32, i32
  }
  func.func @transform_2(%arg0: i32) -> (i32, i32) {
    %c0_i32 = arith.constant 0 : i32
    %c0_i32_0 = arith.constant 0 : i32
    %c0_i32_1 = arith.constant 0 : i32
    return %c0_i32, %c0_i32_0 : i32, i32
  }
  func.func @transform_3(%arg0: i32) -> (i32, i32) {
    %c0_i32 = arith.constant 0 : i32
    %c0_i32_0 = arith.constant 0 : i32
    %c0_i32_1 = arith.constant 0 : i32
    return %c0_i32, %c0_i32_0 : i32, i32
  }
  func.func @transform_4(%arg0: i32) -> (i32, i32) {
    %c0_i32 = arith.constant 0 : i32
    %c0_i32_0 = arith.constant 0 : i32
    %c0_i32_1 = arith.constant 0 : i32
    return %c0_i32, %c0_i32_0 : i32, i32
  }
  func.func @transform_5(%arg0: i32) -> (i32, i32) {
    %c0_i32 = arith.constant 0 : i32
    %c0_i32_0 = arith.constant 0 : i32
    %c0_i32_1 = arith.constant 0 : i32
    return %c0_i32, %c0_i32_0 : i32, i32
  }
  func.func @transform_6(%arg0: i32) -> (i32, i32) {
    %c0_i32 = arith.constant 0 : i32
    %c0_i32_0 = arith.constant 0 : i32
    %c0_i32_1 = arith.constant 0 : i32
    return %c0_i32, %c0_i32_0 : i32, i32
  }
  func.func @transform_7(%arg0: i32) -> (i32, i32) {
    %c0_i32 = arith.constant 0 : i32
    %c0_i32_0 = arith.constant 0 : i32
    return %c0_i32, %arg0 : i32, i32
  }
}

</mosaic_0001>

<llo_original>
// kernel: tpu_custom_call.1
$region0: #{tpu_custom_call.1}
  #allocation0 [shape = 'u32[]', space=smem, size = 0x4, offset = 0x4, fixed_abs, tag = 'smem constant byte address 0x4 - core index']
  #allocation1 [shape = 'u32[144,128]{1,0:T(1,128)}', space=vmem, size = 0x12000, scoped, tag = 'internal scratch']
  %s0 = inlined_call_operand.vmem [shape: f32[9,128], index: 0, kind: input, shape index: {}]
  %s1 = inlined_call_operand.vmem [shape: bf16[256,9], index: 1, kind: input, shape index: {}]
  %s2 = inlined_call_operand.vmem [shape: f32[256,1], index: 2, kind: input, shape index: {}]
  %s3 = inlined_call_operand.vmem [shape: bf16[128,256], index: 3, kind: input, shape index: {}]
  %s4 = inlined_call_operand.vmem [shape: f32[128,1], index: 4, kind: input, shape index: {}]
  %s5 = inlined_call_operand.vmem [shape: bf16[4,128], index: 5, kind: input, shape index: {}]
  %s6 = inlined_call_operand.vmem [shape: f32[4,1], index: 6, kind: input, shape index: {}]
  %s7 = inlined_call_operand.hbm [shape: f32[4,128], index: 7, kind: output, shape index: {}]
  %s8 = sld [smem:[#allocation0]]
  $region38: #{tpu_custom_call.1} parent=0
    _
  %s10 = ssub.s32 1, %s8
  %s11 = scalar_select 0, %s10, %s8
  $region1: #{tpu_custom_call.1} parent=0
    #allocation2 [shape = 'u8[2048]{0}', space=vmem, size = 0x800, scoped, tag = 'output window, operand 0, single buffered']
    #allocation3 [shape = 's32[1]{0}', space=sflag, size = 0x4, scoped, tag = 'scoped memory for tpu_custom_call.1']
    %12 = vsyncpa [#allocation3], 0
    // Predicated region
    $region2: #{tpu_custom_call.1} parent=1 // pred_check
      _
    $region3: #{tpu_custom_call.1} parent=1 // pred_check_branch
      %14 = sbr.rel (0) target = $region5
    $region4: #{tpu_custom_call.1} parent=1 // pred_region
      _
    $region5: #{tpu_custom_call.1} parent=1 // pred_fallthru
      _
    // Predicated region
    $region6: #{tpu_custom_call.1} parent=1 // pred_check
      _
    $region7: #{tpu_custom_call.1} parent=1 // pred_check_branch
      %16 = sbr.rel (0) target = $region9
    $region8: #{tpu_custom_call.1} parent=1 // pred_region
      _
    $region9: #{tpu_custom_call.1} parent=1 // pred_fallthru
      _
    // Predicated region
    $region10: #{tpu_custom_call.1} parent=1 // pred_check
      _
    $region11: #{tpu_custom_call.1} parent=1 // pred_check_branch
      %18 = sbr.rel (0) target = $region13
    $region12: #{tpu_custom_call.1} parent=1 // pred_region
      _
    $region13: #{tpu_custom_call.1} parent=1 // pred_fallthru
      _
    // Predicated region
    $region14: #{tpu_custom_call.1} parent=1 // pred_check
      _
    $region15: #{tpu_custom_call.1} parent=1 // pred_check_branch
      %20 = sbr.rel (0) target = $region17
    $region16: #{tpu_custom_call.1} parent=1 // pred_region
      _
    $region17: #{tpu_custom_call.1} parent=1 // pred_fallthru
      _
    // Predicated region
    $region18: #{tpu_custom_call.1} parent=1 // pred_check
      _
    $region19: #{tpu_custom_call.1} parent=1 // pred_check_branch
      %22 = sbr.rel (0) target = $region21
    $region20: #{tpu_custom_call.1} parent=1 // pred_region
      _
    $region21: #{tpu_custom_call.1} parent=1 // pred_fallthru
      _
    // Predicated region
    $region22: #{tpu_custom_call.1} parent=1 // pred_check
      _
    $region23: #{tpu_custom_call.1} parent=1 // pred_check_branch
      %24 = sbr.rel (0) target = $region25
    $region24: #{tpu_custom_call.1} parent=1 // pred_region
      _
    $region25: #{tpu_custom_call.1} parent=1 // pred_fallthru
      _
    // Predicated region
    $region26: #{tpu_custom_call.1} parent=1 // pred_check
      _
    $region27: #{tpu_custom_call.1} parent=1 // pred_check_branch
      %26 = sbr.rel (0) target = $region29
    $region28: #{tpu_custom_call.1} parent=1 // pred_region
      _
    $region29: #{tpu_custom_call.1} parent=1 // pred_fallthru
      _
    %v28 = vld [vmem:[%s0] sm:$0xff]
    %v29 = vld [vmem:[%s0 + $0x8] sm:$0x1]
    %v30 = vpack.c.bf16 %v29, %v28
    %v31 = vld [vmem:[%s1] sm:$0xf]
    %v32 = vld [vmem:[%s1 + $0x4] sm:$0xf]
    %v33 = vld [vmem:[%s1 + $0x8] sm:$0xf]
    %v34 = vld [vmem:[%s1 + $0xc] sm:$0xf]
    %v35 = vld [vmem:[%s1 + $0x10] sm:$0xf]
    %v36 = vld [vmem:[%s1 + $0x14] sm:$0xf]
    %v37 = vld [vmem:[%s1 + $0x18] sm:$0xf]
    %v38 = vld [vmem:[%s1 + $0x1c] sm:$0xf]
    %v39 = vld [vmem:[%s1 + $0x20] sm:$0xf]
    %v40 = vld [vmem:[%s1 + $0x24] sm:$0xf]
    %v41 = vld [vmem:[%s1 + $0x28] sm:$0xf]
    %v42 = vld [vmem:[%s1 + $0x2c] sm:$0xf]
    %v43 = vld [vmem:[%s1 + $0x30] sm:$0xf]
    %v44 = vld [vmem:[%s1 + $0x34] sm:$0xf]
    %v45 = vld [vmem:[%s1 + $0x38] sm:$0xf]
    %v46 = vld [vmem:[%s1 + $0x3c] sm:$0xf]
    %v47 = vld [vmem:[%s1 + $0x40] sm:$0xf]
    %v48 = vld [vmem:[%s1 + $0x44] sm:$0xf]
    %v49 = vld [vmem:[%s1 + $0x48] sm:$0xf]
    %v50 = vld [vmem:[%s1 + $0x4c] sm:$0xf]
    %v51 = vld [vmem:[%s1 + $0x50] sm:$0xf]
    %v52 = vld [vmem:[%s1 + $0x54] sm:$0xf]
    %v53 = vld [vmem:[%s1 + $0x58] sm:$0xf]
    %v54 = vld [vmem:[%s1 + $0x5c] sm:$0xf]
    %v55 = vld [vmem:[%s1 + $0x60] sm:$0xf]
    %v56 = vld [vmem:[%s1 + $0x64] sm:$0xf]
    %v57 = vld [vmem:[%s1 + $0x68] sm:$0xf]
    %v58 = vld [vmem:[%s1 + $0x6c] sm:$0xf]
    %v59 = vld [vmem:[%s1 + $0x70] sm:$0xf]
    %v60 = vld [vmem:[%s1 + $0x74] sm:$0xf]
    %v61 = vld [vmem:[%s1 + $0x78] sm:$0xf]
    %v62 = vld [vmem:[%s1 + $0x7c] sm:$0xf]
    %v63 = vld [vmem:[%s2] sm:$0xff]
    %v64 = vld [vmem:[%s2 + $0x8] sm:$0xff]
    %v65 = vld [vmem:[%s2 + $0x10] sm:$0xff]
    %v66 = vld [vmem:[%s2 + $0x18] sm:$0xff]
    %v67 = vld [vmem:[%s2 + $0x20] sm:$0xff]
    %v68 = vld [vmem:[%s2 + $0x28] sm:$0xff]
    %v69 = vld [vmem:[%s2 + $0x30] sm:$0xff]
    %v70 = vld [vmem:[%s2 + $0x38] sm:$0xff]
    %v71 = vld [vmem:[%s2 + $0x40] sm:$0xff]
    %v72 = vld [vmem:[%s2 + $0x48] sm:$0xff]
    %v73 = vld [vmem:[%s2 + $0x50] sm:$0xff]
    %v74 = vld [vmem:[%s2 + $0x58] sm:$0xff]
    %v75 = vld [vmem:[%s2 + $0x60] sm:$0xff]
    %v76 = vld [vmem:[%s2 + $0x68] sm:$0xff]
    %v77 = vld [vmem:[%s2 + $0x70] sm:$0xff]
    %v78 = vld [vmem:[%s2 + $0x78] sm:$0xff]
    %v79 = vld [vmem:[%s2 + $0x80] sm:$0xff]
    %v80 = vld [vmem:[%s2 + $0x88] sm:$0xff]
    %v81 = vld [vmem:[%s2 + $0x90] sm:$0xff]
    %v82 = vld [vmem:[%s2 + $0x98] sm:$0xff]
    %v83 = vld [vmem:[%s2 + $0xa0] sm:$0xff]
    %v84 = vld [vmem:[%s2 + $0xa8] sm:$0xff]
    %v85 = vld [vmem:[%s2 + $0xb0] sm:$0xff]
    %v86 = vld [vmem:[%s2 + $0xb8] sm:$0xff]
    %v87 = vld [vmem:[%s2 + $0xc0] sm:$0xff]
    %v88 = vld [vmem:[%s2 + $0xc8] sm:$0xff]
    %v89 = vld [vmem:[%s2 + $0xd0] sm:$0xff]
    %v90 = vld [vmem:[%s2 + $0xd8] sm:$0xff]
    %v91 = vld [vmem:[%s2 + $0xe0] sm:$0xff]
    %v92 = vld [vmem:[%s2 + $0xe8] sm:$0xff]
    %v93 = vld [vmem:[%s2 + $0xf0] sm:$0xff]
    %v94 = vld [vmem:[%s2 + $0xf8] sm:$0xff]
    %96 = vset.pattern.permute.xlu0 0
    %97 = vperm.xlu0 %96, %v63
    %v98 = vpop.permute.xlu0 %97
    %101 = vset.pattern.permute.xlu0 0
    %102 = vperm.xlu0 %101, %v64
    %v103 = vpop.permute.xlu0 %102
    %106 = vset.pattern.permute.xlu0 0
    %107 = vperm.xlu0 %106, %v65
    %v108 = vpop.permute.xlu0 %107
    %111 = vset.pattern.permute.xlu0 0
    %112 = vperm.xlu0 %111, %v66
    %v113 = vpop.permute.xlu0 %112
    %116 = vset.pattern.permute.xlu0 0
    %117 = vperm.xlu0 %116, %v67
    %v118 = vpop.permute.xlu0 %117
    %121 = vset.pattern.permute.xlu0 0
    %122 = vperm.xlu0 %121, %v68
    %v123 = vpop.permute.xlu0 %122
    %126 = vset.pattern.permute.xlu0 0
    %127 = vperm.xlu0 %126, %v69
    %v128 = vpop.permute.xlu0 %127
    %131 = vset.pattern.permute.xlu0 0
    %132 = vperm.xlu0 %131, %v70
    %v133 = vpop.permute.xlu0 %132
    %136 = vset.pattern.permute.xlu0 0
    %137 = vperm.xlu0 %136, %v71
    %v138 = vpop.permute.xlu0 %137
    %141 = vset.pattern.permute.xlu0 0
    %142 = vperm.xlu0 %141, %v72
    %v143 = vpop.permute.xlu0 %142
    %146 = vset.pattern.permute.xlu0 0
    %147 = vperm.xlu0 %146, %v73
    %v148 = vpop.permute.xlu0 %147
    %151 = vset.pattern.permute.xlu0 0
    %152 = vperm.xlu0 %151, %v74
    %v153 = vpop.permute.xlu0 %152
    %156 = vset.pattern.permute.xlu0 0
    %157 = vperm.xlu0 %156, %v75
    %v158 = vpop.permute.xlu0 %157
    %161 = vset.pattern.permute.xlu0 0
    %162 = vperm.xlu0 %161, %v76
    %v163 = vpop.permute.xlu0 %162
    %166 = vset.pattern.permute.xlu0 0
    %167 = vperm.xlu0 %166, %v77
    %v168 = vpop.permute.xlu0 %167
    %171 = vset.pattern.permute.xlu0 0
    %172 = vperm.xlu0 %171, %v78
    %v173 = vpop.permute.xlu0 %172
    %176 = vset.pattern.permute.xlu0 0
    %177 = vperm.xlu0 %176, %v79
    %v178 = vpop.permute.xlu0 %177
    %181 = vset.pattern.permute.xlu0 0
    %182 = vperm.xlu0 %181, %v80
    %v183 = vpop.permute.xlu0 %182
    %186 = vset.pattern.permute.xlu0 0
    %187 = vperm.xlu0 %186, %v81
    %v188 = vpop.permute.xlu0 %187
    %191 = vset.pattern.permute.xlu0 0
    %192 = vperm.xlu0 %191, %v82
    %v193 = vpop.permute.xlu0 %192
    %196 = vset.pattern.permute.xlu0 0
    %197 = vperm.xlu0 %196, %v83
    %v198 = vpop.permute.xlu0 %197
    %201 = vset.pattern.permute.xlu0 0
    %202 = vperm.xlu0 %201, %v84
    %v203 = vpop.permute.xlu0 %202
    %206 = vset.pattern.permute.xlu0 0
    %207 = vperm.xlu0 %206, %v85
    %v208 = vpop.permute.xlu0 %207
    %211 = vset.pattern.permute.xlu0 0
    %212 = vperm.xlu0 %211, %v86
    %v213 = vpop.permute.xlu0 %212
    %216 = vset.pattern.permute.xlu0 0
    %217 = vperm.xlu0 %216, %v87
    %v218 = vpop.permute.xlu0 %217
    %221 = vset.pattern.permute.xlu0 0
    %222 = vperm.xlu0 %221, %v88
    %v223 = vpop.permute.xlu0 %222
    %226 = vset.pattern.permute.xlu0 0
    %227 = vperm.xlu0 %226, %v89
    %v228 = vpop.permute.xlu0 %227
    %231 = vset.pattern.permute.xlu0 0
    %232 = vperm.xlu0 %231, %v90
    %v233 = vpop.permute.xlu0 %232
    %236 = vset.pattern.permute.xlu0 0
    %237 = vperm.xlu0 %236, %v91
    %v238 = vpop.permute.xlu0 %237
    %241 = vset.pattern.permute.xlu0 0
    %242 = vperm.xlu0 %241, %v92
    %v243 = vpop.permute.xlu0 %242
    %246 = vset.pattern.permute.xlu0 0
    %247 = vperm.xlu0 %246, %v93
    %v248 = vpop.permute.xlu0 %247
    %251 = vset.pattern.permute.xlu0 0
    %252 = vperm.xlu0 %251, %v94
    %v253 = vpop.permute.xlu0 %252
    %v287 = vunpack.c.l.b16 %v31
    %v288 = vunpack.c.l.b16 %v32
    %v289 = vunpack.c.l.b16 %v33
    %v290 = vunpack.c.l.b16 %v34
    %v291 = vunpack.c.l.b16 %v35
    %v292 = vunpack.c.l.b16 %v36
    %v293 = vunpack.c.l.b16 %v37
    %v294 = vunpack.c.l.b16 %v38
    %v295 = vunpack.c.l.b16 %v39
    %v296 = vunpack.c.l.b16 %v40
    %v297 = vunpack.c.l.b16 %v41
    %v298 = vunpack.c.l.b16 %v42
    %v299 = vunpack.c.l.b16 %v43
    %v300 = vunpack.c.l.b16 %v44
    %v301 = vunpack.c.l.b16 %v45
    %v302 = vunpack.c.l.b16 %v46
    %v303 = vunpack.c.l.b16 %v47
    %v304 = vunpack.c.l.b16 %v48
    %v305 = vunpack.c.l.b16 %v49
    %v306 = vunpack.c.l.b16 %v50
    %v307 = vunpack.c.l.b16 %v51
    %v308 = vunpack.c.l.b16 %v52
    %v309 = vunpack.c.l.b16 %v53
    %v310 = vunpack.c.l.b16 %v54
    %v311 = vunpack.c.l.b16 %v55
    %v312 = vunpack.c.l.b16 %v56
    %v313 = vunpack.c.l.b16 %v57
    %v314 = vunpack.c.l.b16 %v58
    %v315 = vunpack.c.l.b16 %v59
    %v316 = vunpack.c.l.b16 %v60
    %v317 = vunpack.c.l.b16 %v61
    %v318 = vunpack.c.l.b16 %v62
    %v319 = vpack.c.b16 %v288, %v287
    %v320 = vpack.c.b16 %v290, %v289
    %v321 = vpack.c.b16 %v292, %v291
    %v322 = vpack.c.b16 %v294, %v293
    %v323 = vpack.c.b16 %v296, %v295
    %v324 = vpack.c.b16 %v298, %v297
    %v325 = vpack.c.b16 %v300, %v299
    %v326 = vpack.c.b16 %v302, %v301
    %v327 = vpack.c.b16 %v304, %v303
    %v328 = vpack.c.b16 %v306, %v305
    %v329 = vpack.c.b16 %v308, %v307
    %v330 = vpack.c.b16 %v310, %v309
    %v331 = vpack.c.b16 %v312, %v311
    %v332 = vpack.c.b16 %v314, %v313
    %v333 = vpack.c.b16 %v316, %v315
    %v334 = vpack.c.b16 %v318, %v317
    %vm335 = vcmask 72704
    %v337 = vsel %vm335, %v319, 0
    %v340 = vsel %vm335, %v320, 0
    %v343 = vsel %vm335, %v321, 0
    %v346 = vsel %vm335, %v322, 0
    %v349 = vsel %vm335, %v323, 0
    %v352 = vsel %vm335, %v324, 0
    %v355 = vsel %vm335, %v325, 0
    %v358 = vsel %vm335, %v326, 0
    %v361 = vsel %vm335, %v327, 0
    %v364 = vsel %vm335, %v328, 0
    %v367 = vsel %vm335, %v329, 0
    %v370 = vsel %vm335, %v330, 0
    %v373 = vsel %vm335, %v331, 0
    %v376 = vsel %vm335, %v332, 0
    %v379 = vsel %vm335, %v333, 0
    %v382 = vsel %vm335, %v334, 0
    %vm384 = vcmask 1043456
    %vm385 = vcmask 1044480
    %v386 = vsel %vm384, 4294967295, 65535
    %v387 = vsel %vm385, %v386, 0
    %v389 = vand.u32 %v30, %v387
    %391 = vmatprep.subr.bf16.mxu0 0
    %392 = vmatpush1.bf16.msra.mxu0 %v389
    %393 = vmatprep.subr.bf16.mxu0 0
    %394 = vmatpush1.bf16.msra.mxu0 0
    %395 = vmatprep.subr.bf16.mxu0 0
    %396 = vmatpush1.bf16.msra.mxu0 0
    %397 = vmatprep.subr.bf16.mxu0 0
    %398 = vmatpush1.bf16.msra.mxu0 0
    %399 = vmatprep.subr.bf16.mxu0 0
    %400 = vmatpush1.bf16.msra.mxu0 0
    %401 = vmatprep.subr.bf16.mxu0 0
    %402 = vmatpush1.bf16.msra.mxu0 0
    %403 = vmatprep.subr.bf16.mxu0 0
    %404 = vmatpush1.bf16.msra.mxu0 0
    %405 = vmatprep.subr.bf16.mxu0 0
    %406 = vmatpush1.bf16.msra.mxu0 0
    %407 = vmatprep.subr.bf16.mxu0 0
    %408 = vmatpush1.bf16.msra.mxu0 0
    %409 = vmatprep.subr.bf16.mxu0 0
    %410 = vmatpush1.bf16.msra.mxu0 0
    %411 = vmatprep.subr.bf16.mxu0 0
    %412 = vmatpush1.bf16.msra.mxu0 0
    %413 = vmatprep.subr.bf16.mxu0 0
    %414 = vmatpush1.bf16.msra.mxu0 0
    %415 = vmatprep.subr.bf16.mxu0 0
    %416 = vmatpush1.bf16.msra.mxu0 0
    %417 = vmatprep.subr.bf16.mxu0 0
    %418 = vmatpush1.bf16.msra.mxu0 0
    %419 = vmatprep.subr.bf16.mxu0 0
    %420 = vmatpush1.bf16.msra.mxu0 0
    %421 = vmatprep.subr.bf16.mxu0 0
    %422 = vmatpush1.bf16.msra.mxu0 0
    %423 = vmatprep.mubr.bf16.mxu0 0
    %424 = vmatmul.mubr.bf16.gmra.mrb[0].mxu0 %v337
    %v425 = vpop.f32.mrb[0].mxu0
    %v426 = vadd.f32 %v98, %v425
    %v427 = vpop.f32.mrb[0].mxu0
    %v428 = vpop.f32.mrb[0].mxu0
    %v429 = vadd.f32 %v103, %v428
    %v430 = vpop.f32.mrb[0].mxu0
    %431 = vmatprep.mubr.bf16.mxu0 0
    %432 = vmatmul.mubr.bf16.gmra.mrb[0].mxu0 %v340
    %v433 = vpop.f32.mrb[0].mxu0
    %v434 = vadd.f32 %v108, %v433
    %v435 = vpop.f32.mrb[0].mxu0
    %v436 = vpop.f32.mrb[0].mxu0
    %v437 = vadd.f32 %v113, %v436
    %v438 = vpop.f32.mrb[0].mxu0
    %439 = vmatprep.mubr.bf16.mxu0 0
    %440 = vmatmul.mubr.bf16.gmra.mrb[0].mxu0 %v343
    %v441 = vpop.f32.mrb[0].mxu0
    %v442 = vadd.f32 %v118, %v441
    %v443 = vpop.f32.mrb[0].mxu0
    %v444 = vpop.f32.mrb[0].mxu0
    %v445 = vadd.f32 %v123, %v444
    %v446 = vpop.f32.mrb[0].mxu0
    %447 = vmatprep.mubr.bf16.mxu0 0
    %448 = vmatmul.mubr.bf16.gmra.mrb[0].mxu0 %v346
    %v449 = vpop.f32.mrb[0].mxu0
    %v450 = vadd.f32 %v128, %v449
    %v451 = vpop.f32.mrb[0].mxu0
    %v452 = vpop.f32.mrb[0].mxu0
    %v453 = vadd.f32 %v133, %v452
    %v454 = vpop.f32.mrb[0].mxu0
    %455 = vmatprep.mubr.bf16.mxu0 0
    %456 = vmatmul.mubr.bf16.gmra.mrb[0].mxu0 %v349
    %v457 = vpop.f32.mrb[0].mxu0
    %v458 = vadd.f32 %v138, %v457
    %v459 = vpop.f32.mrb[0].mxu0
    %v460 = vpop.f32.mrb[0].mxu0
    %v461 = vadd.f32 %v143, %v460
    %v462 = vpop.f32.mrb[0].mxu0
    %463 = vmatprep.mubr.bf16.mxu0 0
    %464 = vmatmul.mubr.bf16.gmra.mrb[0].mxu0 %v352
    %v465 = vpop.f32.mrb[0].mxu0
    %v466 = vadd.f32 %v148, %v465
    %v467 = vpop.f32.mrb[0].mxu0
    %v468 = vpop.f32.mrb[0].mxu0
    %v469 = vadd.f32 %v153, %v468
    %v470 = vpop.f32.mrb[0].mxu0
    %471 = vmatprep.mubr.bf16.mxu0 0
    %472 = vmatmul.mubr.bf16.gmra.mrb[0].mxu0 %v355
    %v473 = vpop.f32.mrb[0].mxu0
    %v474 = vadd.f32 %v158, %v473
    %v475 = vpop.f32.mrb[0].mxu0
    %v476 = vpop.f32.mrb[0].mxu0
    %v477 = vadd.f32 %v163, %v476
    %v478 = vpop.f32.mrb[0].mxu0
    %479 = vmatprep.mubr.bf16.mxu0 0
    %480 = vmatmul.mubr.bf16.gmra.mrb[0].mxu0 %v358
    %v481 = vpop.f32.mrb[0].mxu0
    %v482 = vadd.f32 %v168, %v481
    %v483 = vpop.f32.mrb[0].mxu0
    %v484 = vpop.f32.mrb[0].mxu0
    %v485 = vadd.f32 %v173, %v484
    %v486 = vpop.f32.mrb[0].mxu0
    %487 = vmatprep.mubr.bf16.mxu0 0
    %488 = vmatmul.mubr.bf16.gmra.mrb[0].mxu0 %v361
    %v489 = vpop.f32.mrb[0].mxu0
    %v490 = vadd.f32 %v178, %v489
    %v491 = vpop.f32.mrb[0].mxu0
    %v492 = vpop.f32.mrb[0].mxu0
    %v493 = vadd.f32 %v183, %v492
    %v494 = vpop.f32.mrb[0].mxu0
    %495 = vmatprep.mubr.bf16.mxu0 0
    %496 = vmatmul.mubr.bf16.gmra.mrb[0].mxu0 %v364
    %v497 = vpop.f32.mrb[0].mxu0
    %v498 = vadd.f32 %v188, %v497
    %v499 = vpop.f32.mrb[0].mxu0
    %v500 = vpop.f32.mrb[0].mxu0
    %v501 = vadd.f32 %v193, %v500
    %v502 = vpop.f32.mrb[0].mxu0
    %503 = vmatprep.mubr.bf16.mxu0 0
    %504 = vmatmul.mubr.bf16.gmra.mrb[0].mxu0 %v367
    %v505 = vpop.f32.mrb[0].mxu0
    %v506 = vadd.f32 %v198, %v505
    %v507 = vpop.f32.mrb[0].mxu0
    %v508 = vpop.f32.mrb[0].mxu0
    %v509 = vadd.f32 %v203, %v508
    %v510 = vpop.f32.mrb[0].mxu0
    %511 = vmatprep.mubr.bf16.mxu0 0
    %512 = vmatmul.mubr.bf16.gmra.mrb[0].mxu0 %v370
    %v513 = vpop.f32.mrb[0].mxu0
    %v514 = vadd.f32 %v208, %v513
    %v515 = vpop.f32.mrb[0].mxu0
    %v516 = vpop.f32.mrb[0].mxu0
    %v517 = vadd.f32 %v213, %v516
    %v518 = vpop.f32.mrb[0].mxu0
    %519 = vmatprep.mubr.bf16.mxu0 0
    %520 = vmatmul.mubr.bf16.gmra.mrb[0].mxu0 %v373
    %v521 = vpop.f32.mrb[0].mxu0
    %v522 = vadd.f32 %v218, %v521
    %v523 = vpop.f32.mrb[0].mxu0
    %v524 = vpop.f32.mrb[0].mxu0
    %v525 = vadd.f32 %v223, %v524
    %v526 = vpop.f32.mrb[0].mxu0
    %527 = vmatprep.mubr.bf16.mxu0 0
    %528 = vmatmul.mubr.bf16.gmra.mrb[0].mxu0 %v376
    %v529 = vpop.f32.mrb[0].mxu0
    %v530 = vadd.f32 %v228, %v529
    %v531 = vpop.f32.mrb[0].mxu0
    %v532 = vpop.f32.mrb[0].mxu0
    %v533 = vadd.f32 %v233, %v532
    %v534 = vpop.f32.mrb[0].mxu0
    %535 = vmatprep.mubr.bf16.mxu0 0
    %536 = vmatmul.mubr.bf16.gmra.mrb[0].mxu0 %v379
    %v537 = vpop.f32.mrb[0].mxu0
    %v538 = vadd.f32 %v238, %v537
    %v539 = vpop.f32.mrb[0].mxu0
    %v540 = vpop.f32.mrb[0].mxu0
    %v541 = vadd.f32 %v243, %v540
    %v542 = vpop.f32.mrb[0].mxu0
    %543 = vmatprep.mubr.bf16.mxu0 0
    %544 = vmatmul.mubr.bf16.gmra.mrb[0].mxu0 %v382
    %v545 = vpop.f32.mrb[0].mxu0
    %v546 = vadd.f32 %v248, %v545
    %v547 = vpop.f32.mrb[0].mxu0
    %v548 = vpop.f32.mrb[0].mxu0
    %v549 = vadd.f32 %v253, %v548
    %v550 = vpop.f32.mrb[0].mxu0
    %551 = vdwg.mxu0
    %v552 = vmax.f32 %v426, 0.0
    %v553 = vmax.f32 %v429, 0.0
    %v554 = vmax.f32 %v434, 0.0
    %v555 = vmax.f32 %v437, 0.0
    %v556 = vmax.f32 %v442, 0.0
    %v557 = vmax.f32 %v445, 0.0
    %v558 = vmax.f32 %v450, 0.0
    %v559 = vmax.f32 %v453, 0.0
    %v560 = vmax.f32 %v458, 0.0
    %v561 = vmax.f32 %v461, 0.0
    %v562 = vmax.f32 %v466, 0.0
    %v563 = vmax.f32 %v469, 0.0
    %v564 = vmax.f32 %v474, 0.0
    %v565 = vmax.f32 %v477, 0.0
    %v566 = vmax.f32 %v482, 0.0
    %v567 = vmax.f32 %v485, 0.0
    %v568 = vmax.f32 %v490, 0.0
    %v569 = vmax.f32 %v493, 0.0
    %v570 = vmax.f32 %v498, 0.0
    %v571 = vmax.f32 %v501, 0.0
    %v572 = vmax.f32 %v506, 0.0
    %v573 = vmax.f32 %v509, 0.0
    %v574 = vmax.f32 %v514, 0.0
    %v575 = vmax.f32 %v517, 0.0
    %v576 = vmax.f32 %v522, 0.0
    %v577 = vmax.f32 %v525, 0.0
    %v578 = vmax.f32 %v530, 0.0
    %v579 = vmax.f32 %v533, 0.0
    %v580 = vmax.f32 %v538, 0.0
    %v581 = vmax.f32 %v541, 0.0
    %v582 = vmax.f32 %v546, 0.0
    %v583 = vmax.f32 %v549, 0.0
    %v584 = vld [vmem:[%s3] sm:$0xff]
    %v585 = vld [vmem:[%s3 + $0x8] sm:$0xff]
    %v586 = vld [vmem:[%s3 + $0x10] sm:$0xff]
    %v587 = vld [vmem:[%s3 + $0x18] sm:$0xff]
    %v588 = vld [vmem:[%s3 + $0x20] sm:$0xff]
    %v589 = vld [vmem:[%s3 + $0x28] sm:$0xff]
    %v590 = vld [vmem:[%s3 + $0x30] sm:$0xff]
    %v591 = vld [vmem:[%s3 + $0x38] sm:$0xff]
    %v592 = vld [vmem:[%s3 + $0x40] sm:$0xff]
    %v593 = vld [vmem:[%s3 + $0x48] sm:$0xff]
    %v594 = vld [vmem:[%s3 + $0x50] sm:$0xff]
    %v595 = vld [vmem:[%s3 + $0x58] sm:$0xff]
    %v596 = vld [vmem:[%s3 + $0x60] sm:$0xff]
    %v597 = vld [vmem:[%s3 + $0x68] sm:$0xff]
    %v598 = vld [vmem:[%s3 + $0x70] sm:$0xff]
    %v599 = vld [vmem:[%s3 + $0x78] sm:$0xff]
    %v600 = vpack.c.bf16 %v553, %v552
    %v601 = vpack.c.bf16 %v555, %v554
    %v602 = vpack.c.bf16 %v557, %v556
    %v603 = vpack.c.bf16 %v559, %v558
    %v604 = vpack.c.bf16 %v561, %v560
    %v605 = vpack.c.bf16 %v563, %v562
    %v606 = vpack.c.bf16 %v565, %v564
    %v607 = vpack.c.bf16 %v567, %v566
    %v608 = vpack.c.bf16 %v569, %v568
    %v609 = vpack.c.bf16 %v571, %v570
    %v610 = vpack.c.bf16 %v573, %v572
    %v611 = vpack.c.bf16 %v575, %v574
    %v612 = vpack.c.bf16 %v577, %v576
    %v613 = vpack.c.bf16 %v579, %v578
    %v614 = vpack.c.bf16 %v581, %v580
    %v615 = vpack.c.bf16 %v583, %v582
    %v616 = vld [vmem:[%s4] sm:$0xff]
    %v617 = vld [vmem:[%s4 + $0x8] sm:$0xff]
    %v618 = vld [vmem:[%s4 + $0x10] sm:$0xff]
    %v619 = vld [vmem:[%s4 + $0x18] sm:$0xff]
    %v620 = vld [vmem:[%s4 + $0x20] sm:$0xff]
    %v621 = vld [vmem:[%s4 + $0x28] sm:$0xff]
    %v622 = vld [vmem:[%s4 + $0x30] sm:$0xff]
    %v623 = vld [vmem:[%s4 + $0x38] sm:$0xff]
    %v624 = vld [vmem:[%s4 + $0x40] sm:$0xff]
    %v625 = vld [vmem:[%s4 + $0x48] sm:$0xff]
    %v626 = vld [vmem:[%s4 + $0x50] sm:$0xff]
    %v627 = vld [vmem:[%s4 + $0x58] sm:$0xff]
    %v628 = vld [vmem:[%s4 + $0x60] sm:$0xff]
    %v629 = vld [vmem:[%s4 + $0x68] sm:$0xff]
    %v630 = vld [vmem:[%s4 + $0x70] sm:$0xff]
    %v631 = vld [vmem:[%s4 + $0x78] sm:$0xff]
    %633 = vset.pattern.permute.xlu0 0
    %634 = vperm.xlu0 %633, %v616
    %v635 = vpop.permute.xlu0 %634
    %638 = vset.pattern.permute.xlu0 0
    %639 = vperm.xlu0 %638, %v617
    %v640 = vpop.permute.xlu0 %639
    %643 = vset.pattern.permute.xlu0 0
    %644 = vperm.xlu0 %643, %v618
    %v645 = vpop.permute.xlu0 %644
    %648 = vset.pattern.permute.xlu0 0
    %649 = vperm.xlu0 %648, %v619
    %v650 = vpop.permute.xlu0 %649
    %653 = vset.pattern.permute.xlu0 0
    %654 = vperm.xlu0 %653, %v620
    %v655 = vpop.permute.xlu0 %654
    %658 = vset.pattern.permute.xlu0 0
    %659 = vperm.xlu0 %658, %v621
    %v660 = vpop.permute.xlu0 %659
    %663 = vset.pattern.permute.xlu0 0
    %664 = vperm.xlu0 %663, %v622
    %v665 = vpop.permute.xlu0 %664
    %668 = vset.pattern.permute.xlu0 0
    %669 = vperm.xlu0 %668, %v623
    %v670 = vpop.permute.xlu0 %669
    %673 = vset.pattern.permute.xlu0 0
    %674 = vperm.xlu0 %673, %v624
    %v675 = vpop.permute.xlu0 %674
    %678 = vset.pattern.permute.xlu0 0
    %679 = vperm.xlu0 %678, %v625
    %v680 = vpop.permute.xlu0 %679
    %683 = vset.pattern.permute.xlu0 0
    %684 = vperm.xlu0 %683, %v626
    %v685 = vpop.permute.xlu0 %684
    %688 = vset.pattern.permute.xlu0 0
    %689 = vperm.xlu0 %688, %v627
    %v690 = vpop.permute.xlu0 %689
    %693 = vset.pattern.permute.xlu0 0
    %694 = vperm.xlu0 %693, %v628
    %v695 = vpop.permute.xlu0 %694
    %698 = vset.pattern.permute.xlu0 0
    %699 = vperm.xlu0 %698, %v629
    %v700 = vpop.permute.xlu0 %699
    %703 = vset.pattern.permute.xlu0 0
    %704 = vperm.xlu0 %703, %v630
    %v705 = vpop.permute.xlu0 %704
    %708 = vset.pattern.permute.xlu0 0
    %709 = vperm.xlu0 %708, %v631
    %v710 = vpop.permute.xlu0 %709
    %v728 = vunpack.c.l.b16 %v584
    %v729 = vunpack.c.h.b16 %v584
    %v730 = vunpack.c.l.b16 %v585
    %v731 = vunpack.c.h.b16 %v585
    %v732 = vunpack.c.l.b16 %v586
    %v733 = vunpack.c.h.b16 %v586
    %v734 = vunpack.c.l.b16 %v587
    %v735 = vunpack.c.h.b16 %v587
    %v736 = vunpack.c.l.b16 %v588
    %v737 = vunpack.c.h.b16 %v588
    %v738 = vunpack.c.l.b16 %v589
    %v739 = vunpack.c.h.b16 %v589
    %v740 = vunpack.c.l.b16 %v590
    %v741 = vunpack.c.h.b16 %v590
    %v742 = vunpack.c.l.b16 %v591
    %v743 = vunpack.c.h.b16 %v591
    %v744 = vunpack.c.l.b16 %v592
    %v745 = vunpack.c.h.b16 %v592
    %v746 = vunpack.c.l.b16 %v593
    %v747 = vunpack.c.h.b16 %v593
    %v748 = vunpack.c.l.b16 %v594
    %v749 = vunpack.c.h.b16 %v594
    %v750 = vunpack.c.l.b16 %v595
    %v751 = vunpack.c.h.b16 %v595
    %v752 = vunpack.c.l.b16 %v596
    %v753 = vunpack.c.h.b16 %v596
    %v754 = vunpack.c.l.b16 %v597
    %v755 = vunpack.c.h.b16 %v597
    %v756 = vunpack.c.l.b16 %v598
    %v757 = vunpack.c.h.b16 %v598
    %v758 = vunpack.c.l.b16 %v599
    %v759 = vunpack.c.h.b16 %v599
    %v760 = vpack.c.b16 %v730, %v728
    %v761 = vpack.c.b16 %v731, %v729
    %v762 = vpack.c.b16 %v734, %v732
    %v763 = vpack.c.b16 %v735, %v733
    %v764 = vpack.c.b16 %v738, %v736
    %v765 = vpack.c.b16 %v739, %v737
    %v766 = vpack.c.b16 %v742, %v740
    %v767 = vpack.c.b16 %v743, %v741
    %v768 = vpack.c.b16 %v746, %v744
    %v769 = vpack.c.b16 %v747, %v745
    %v770 = vpack.c.b16 %v750, %v748
    %v771 = vpack.c.b16 %v751, %v749
    %v772 = vpack.c.b16 %v754, %v752
    %v773 = vpack.c.b16 %v755, %v753
    %v774 = vpack.c.b16 %v758, %v756
    %v775 = vpack.c.b16 %v759, %v757
    %792 = vmatprep.subr.bf16.mxu0 0
    %793 = vmatpush1.bf16.msra.mxu0 %v600
    %794 = vmatprep.subr.bf16.mxu0 0
    %795 = vmatpush1.bf16.msra.mxu0 %v601
    %796 = vmatprep.subr.bf16.mxu0 0
    %797 = vmatpush1.bf16.msra.mxu0 %v602
    %798 = vmatprep.subr.bf16.mxu0 0
    %799 = vmatpush1.bf16.msra.mxu0 %v603
    %800 = vmatprep.subr.bf16.mxu0 0
    %801 = vmatpush1.bf16.msra.mxu0 %v604
    %802 = vmatprep.subr.bf16.mxu0 0
    %803 = vmatpush1.bf16.msra.mxu0 %v605
    %804 = vmatprep.subr.bf16.mxu0 0
    %805 = vmatpush1.bf16.msra.mxu0 %v606
    %806 = vmatprep.subr.bf16.mxu0 0
    %807 = vmatpush1.bf16.msra.mxu0 %v607
    %808 = vmatprep.subr.bf16.mxu0 0
    %809 = vmatpush1.bf16.msra.mxu0 %v608
    %810 = vmatprep.subr.bf16.mxu0 0
    %811 = vmatpush1.bf16.msra.mxu0 %v609
    %812 = vmatprep.subr.bf16.mxu0 0
    %813 = vmatpush1.bf16.msra.mxu0 %v610
    %814 = vmatprep.subr.bf16.mxu0 0
    %815 = vmatpush1.bf16.msra.mxu0 %v611
    %816 = vmatprep.subr.bf16.mxu0 0
    %817 = vmatpush1.bf16.msra.mxu0 %v612
    %818 = vmatprep.subr.bf16.mxu0 0
    %819 = vmatpush1.bf16.msra.mxu0 %v613
    %820 = vmatprep.subr.bf16.mxu0 0
    %821 = vmatpush1.bf16.msra.mxu0 %v614
    %822 = vmatprep.subr.bf16.mxu0 0
    %823 = vmatpush1.bf16.msra.mxu0 %v615
    %824 = vmatprep.mubr.bf16.mxu0 %v761
    %825 = vmatmul.mubr.bf16.gmra.mrb[0].mxu0 %v760
    %v826 = vpop.f32.mrb[0].mxu0
    %v827 = vadd.f32 %v635, %v826
    %v828 = vpop.f32.mrb[0].mxu0
    %v829 = vpop.f32.mrb[0].mxu0
    %v830 = vadd.f32 %v640, %v829
    %v831 = vpop.f32.mrb[0].mxu0
    %832 = vmatprep.mubr.bf16.mxu0 %v763
    %833 = vmatmul.mubr.bf16.gmra.mrb[0].mxu0 %v762
    %v834 = vpop.f32.mrb[0].mxu0
    %v835 = vadd.f32 %v645, %v834
    %v836 = vpop.f32.mrb[0].mxu0
    %v837 = vpop.f32.mrb[0].mxu0
    %v838 = vadd.f32 %v650, %v837
    %v839 = vpop.f32.mrb[0].mxu0
    %840 = vmatprep.mubr.bf16.mxu0 %v765
    %841 = vmatmul.mubr.bf16.gmra.mrb[0].mxu0 %v764
    %v842 = vpop.f32.mrb[0].mxu0
    %v843 = vadd.f32 %v655, %v842
    %v844 = vpop.f32.mrb[0].mxu0
    %v845 = vpop.f32.mrb[0].mxu0
    %v846 = vadd.f32 %v660, %v845
    %v847 = vpop.f32.mrb[0].mxu0
    %848 = vmatprep.mubr.bf16.mxu0 %v767
    %849 = vmatmul.mubr.bf16.gmra.mrb[0].mxu0 %v766
    %v850 = vpop.f32.mrb[0].mxu0
    %v851 = vadd.f32 %v665, %v850
    %v852 = vpop.f32.mrb[0].mxu0
    %v853 = vpop.f32.mrb[0].mxu0
    %v854 = vadd.f32 %v670, %v853
    %v855 = vpop.f32.mrb[0].mxu0
    %856 = vmatprep.mubr.bf16.mxu0 %v769
    %857 = vmatmul.mubr.bf16.gmra.mrb[0].mxu0 %v768
    %v858 = vpop.f32.mrb[0].mxu0
    %v859 = vadd.f32 %v675, %v858
    %v860 = vpop.f32.mrb[0].mxu0
    %v861 = vpop.f32.mrb[0].mxu0
    %v862 = vadd.f32 %v680, %v861
    %v863 = vpop.f32.mrb[0].mxu0
    %864 = vmatprep.mubr.bf16.mxu0 %v771
    %865 = vmatmul.mubr.bf16.gmra.mrb[0].mxu0 %v770
    %v866 = vpop.f32.mrb[0].mxu0
    %v867 = vadd.f32 %v685, %v866
    %v868 = vpop.f32.mrb[0].mxu0
    %v869 = vpop.f32.mrb[0].mxu0
    %v870 = vadd.f32 %v690, %v869
    %v871 = vpop.f32.mrb[0].mxu0
    %872 = vmatprep.mubr.bf16.mxu0 %v773
    %873 = vmatmul.mubr.bf16.gmra.mrb[0].mxu0 %v772
    %v874 = vpop.f32.mrb[0].mxu0
    %v875 = vadd.f32 %v695, %v874
    %v876 = vpop.f32.mrb[0].mxu0
    %v877 = vpop.f32.mrb[0].mxu0
    %v878 = vadd.f32 %v700, %v877
    %v879 = vpop.f32.mrb[0].mxu0
    %880 = vmatprep.mubr.bf16.mxu0 %v775
    %881 = vmatmul.mubr.bf16.gmra.mrb[0].mxu0 %v774
    %v882 = vpop.f32.mrb[0].mxu0
    %v883 = vadd.f32 %v705, %v882
    %v884 = vpop.f32.mrb[0].mxu0
    %v885 = vpop.f32.mrb[0].mxu0
    %v886 = vadd.f32 %v710, %v885
    %v887 = vpop.f32.mrb[0].mxu0
    %888 = vdwg.mxu0
    %v889 = vmax.f32 %v827, 0.0
    %v890 = vmax.f32 %v830, 0.0
    %v891 = vmax.f32 %v835, 0.0
    %v892 = vmax.f32 %v838, 0.0
    %v893 = vmax.f32 %v843, 0.0
    %v894 = vmax.f32 %v846, 0.0
    %v895 = vmax.f32 %v851, 0.0
    %v896 = vmax.f32 %v854, 0.0
    %v897 = vmax.f32 %v859, 0.0
    %v898 = vmax.f32 %v862, 0.0
    %v899 = vmax.f32 %v867, 0.0
    %v900 = vmax.f32 %v870, 0.0
    %v901 = vmax.f32 %v875, 0.0
    %v902 = vmax.f32 %v878, 0.0
    %v903 = vmax.f32 %v883, 0.0
    %v904 = vmax.f32 %v886, 0.0
    %v905 = vld [vmem:[%s5] sm:$0x3]
    %v906 = vpack.c.bf16 %v890, %v889
    %v907 = vpack.c.bf16 %v892, %v891
    %v908 = vpack.c.bf16 %v894, %v893
    %v909 = vpack.c.bf16 %v896, %v895
    %v910 = vpack.c.bf16 %v898, %v897
    %v911 = vpack.c.bf16 %v900, %v899
    %v912 = vpack.c.bf16 %v902, %v901
    %v913 = vpack.c.bf16 %v904, %v903
    %v914 = vld [vmem:[%s6] sm:$0xf]
    %916 = vset.pattern.permute.xlu0 0
    %917 = vperm.xlu0 %916, %v914
    %v918 = vpop.permute.xlu0 %917
    %920 = vmatprep.subr.bf16.mxu0 0
    %921 = vmatpush1.bf16.msra.mxu0 %v906
    %922 = vmatprep.subr.bf16.mxu0 0
    %923 = vmatpush1.bf16.msra.mxu0 %v907
    %924 = vmatprep.subr.bf16.mxu0 0
    %925 = vmatpush1.bf16.msra.mxu0 %v908
    %926 = vmatprep.subr.bf16.mxu0 0
    %927 = vmatpush1.bf16.msra.mxu0 %v909
    %928 = vmatprep.subr.bf16.mxu0 0
    %929 = vmatpush1.bf16.msra.mxu0 %v910
    %930 = vmatprep.subr.bf16.mxu0 0
    %931 = vmatpush1.bf16.msra.mxu0 %v911
    %932 = vmatprep.subr.bf16.mxu0 0
    %933 = vmatpush1.bf16.msra.mxu0 %v912
    %934 = vmatprep.subr.bf16.mxu0 0
    %935 = vmatpush1.bf16.msra.mxu0 %v913
    %936 = vmatprep.subr.bf16.mxu0 0
    %937 = vmatpush1.bf16.msra.mxu0 0
    %938 = vmatprep.subr.bf16.mxu0 0
    %939 = vmatpush1.bf16.msra.mxu0 0
    %940 = vmatprep.subr.bf16.mxu0 0
    %941 = vmatpush1.bf16.msra.mxu0 0
    %942 = vmatprep.subr.bf16.mxu0 0
    %943 = vmatpush1.bf16.msra.mxu0 0
    %944 = vmatprep.subr.bf16.mxu0 0
    %945 = vmatpush1.bf16.msra.mxu0 0
    %946 = vmatprep.subr.bf16.mxu0 0
    %947 = vmatpush1.bf16.msra.mxu0 0
    %948 = vmatprep.subr.bf16.mxu0 0
    %949 = vmatpush1.bf16.msra.mxu0 0
    %950 = vmatprep.subr.bf16.mxu0 0
    %951 = vmatpush1.bf16.msra.mxu0 0
    %952 = vmatprep.mubr.bf16.mxu0 0
    %953 = vmatmul.mubr.bf16.gmra.mrb[0].mxu0 %v905
    %v954 = vpop.f32.mrb[0].mxu0
    %v955 = vadd.f32 %v918, %v954
    %v956 = vpop.f32.mrb[0].mxu0
    %v957 = vpop.f32.mrb[0].mxu0
    %v958 = vpop.f32.mrb[0].mxu0
    %959 = vdwg.mxu0
    %960 = vst [vmem:[#allocation2] sm:$0xf] %v955
    // Predicated region
    $region30: #{tpu_custom_call.1} parent=1 // pred_check
      _
    $region31: #{tpu_custom_call.1} parent=1 // pred_check_branch
      %962 = sbr.rel (0) target = $region33
    $region32: #{tpu_custom_call.1} parent=1 // pred_region
      %s964 = ssub.s32 64, 64
      %965 = vsyncadd [#allocation3], %s964
      %s967 = sshll.u32 [#allocation2], 4
      %s968 = int_to_ptr.vmem [resolvable:$true] %s967
      %970 = dma.vmem_to_hbm [thread:$0]  %s968, 64, %s7, [#allocation3]
    $region33: #{tpu_custom_call.1} parent=1 // pred_fallthru
      _
    // Predicated region
    $region34: #{tpu_custom_call.1} parent=1 // pred_check
      _
    $region35: #{tpu_custom_call.1} parent=1 // pred_check_branch
      %972 = sbr.rel (0) target = $region37
    $region36: #{tpu_custom_call.1} parent=1 // pred_region
      %973 = dma.done [#allocation3], 64
    $region37: #{tpu_custom_call.1} parent=1 // pred_fallthru
      _
    %974 = vsyncpa [#allocation3], 1

</llo_original>
